<compile_context>
chip_gen: v7x
topology: tpu7x:2x2x1
jax: 0.10.0
libtpu: 0.0.40
codegen_flags: <defaults>
</compile_context>

<pallas_src>
import functools

import jax
import jax.numpy as jnp
from jax.experimental import pallas as pl
from jax.experimental.pallas import tpu as pltpu


def _esm1_layernorm_kernel(x_ref, w_ref, b_ref, o_ref, *, eps, hidden_valid):
    # x_ref/o_ref: (tm, Hp) tiles; w_ref/b_ref: (1, Hp) f32, resident across grid.
    # Hp may be zero-padded up to a multiple of 128; hidden_valid is the true H.
    x = x_ref[...].astype(jnp.float32)
    h_pad = x.shape[-1]
    inv_h = 1.0 / float(hidden_valid)

    mean = jnp.sum(x, axis=-1, keepdims=True) * inv_h  # zero-padded cols add 0
    xz = x - mean
    if hidden_valid == h_pad:
        var = jnp.sum(xz * xz, axis=-1, keepdims=True) * inv_h
    else:
        # Padded columns hold (0 - mean); mask them out of the variance.
        lane = jax.lax.broadcasted_iota(jnp.int32, x.shape, dimension=1)
        xz_sq = jnp.where(lane < hidden_valid, xz * xz, 0.0)
        var = jnp.sum(xz_sq, axis=-1, keepdims=True) * inv_h

    inv = jax.lax.rsqrt(var + eps)          # EUP; eps inside the sqrt (TF style)
    y = xz * inv
    o_ref[...] = (w_ref[...] * y + b_ref[...]).astype(o_ref.dtype)


def _round_up(x, m):
    return ((x + m - 1) // m) * m


def _pick_row_tile(rows, h_pad, itemsize):
    """Largest row tile (multiple of the sublane pack) fitting a VMEM budget."""
    sub = 8 * max(1, 4 // itemsize)              # 8 (f32) / 16 (bf16) / 32 (int8)
    # 2x double-buffered input + 2x output tiles, plus ~3 f32 temporaries/elem.
    per_row_bytes = (4 * itemsize + 12) * h_pad
    budget = 40 * 1024 * 1024                    # stays well under v7x's 64 MiB VMEM
    tm = (budget // per_row_bytes) // sub * sub
    tm = max(sub, min(tm, 1024))                 # ~512+ rows already saturates HBM
    tm = min(tm, _round_up(rows, sub))           # don't exceed the (rounded) array
    return int(tm)


def esm1_layernorm(x, weight, bias, eps=1e-12, *, row_tile=None):
    """TF-style LayerNorm over the trailing `weight.ndim` dims of `x`."""
    norm_ndim = weight.ndim if weight is not None else 1
    hidden = 1
    for d in x.shape[x.ndim - norm_ndim:]:
        hidden *= d
    rows = 1
    for d in x.shape[: x.ndim - norm_ndim]:
        rows *= d

    if weight is None:
        weight = jnp.ones((hidden,), jnp.float32)
    if bias is None:
        bias = jnp.zeros((hidden,), jnp.float32)

    orig_shape = x.shape
    x2 = x.reshape(rows, hidden)
    w2 = weight.reshape(1, hidden).astype(jnp.float32)
    b2 = bias.reshape(1, hidden).astype(jnp.float32)

    # Lane-dense hidden: pad to a multiple of 128 only when needed.
    # (Real ESM hiddens 768/1280/... are already multiples of 128 -> no-op.)
    h_pad = _round_up(hidden, 128)
    if h_pad != hidden:
        x2 = jnp.pad(x2, ((0, 0), (0, h_pad - hidden)))
        w2 = jnp.pad(w2, ((0, 0), (0, h_pad - hidden)))
        b2 = jnp.pad(b2, ((0, 0), (0, h_pad - hidden)))

    itemsize = jnp.dtype(x.dtype).itemsize
    tm = int(row_tile) if row_tile is not None else _pick_row_tile(rows, h_pad, itemsize)

    # No row padding: Pallas clips the partial last block (rows are independent,
    # OOB rows never reach HBM).
    grid = (pl.cdiv(rows, tm),)

    kernel = functools.partial(
        _esm1_layernorm_kernel, eps=float(eps), hidden_valid=hidden
    )

    out = pl.pallas_call(
        kernel,
        out_shape=jax.ShapeDtypeStruct((rows, h_pad), x.dtype),
        grid_spec=pltpu.PrefetchScalarGridSpec(
            num_scalar_prefetch=0,
            grid=grid,
            in_specs=[
                pl.BlockSpec((tm, h_pad), lambda i: (i, 0)),
                pl.BlockSpec((1, h_pad), lambda i: (0, 0)),   # resident params
                pl.BlockSpec((1, h_pad), lambda i: (0, 0)),
            ],
            out_specs=pl.BlockSpec((tm, h_pad), lambda i: (i, 0)),
        ),
        compiler_params=pltpu.CompilerParams(
            dimension_semantics=("parallel",),     # v7x: both TCs shard the grid
            vmem_limit_bytes=64 * 1024 * 1024,     # keep double-buffering for big tiles
        ),
    )(x2, w2, b2)

    if h_pad != hidden:
        out = out[:, :hidden]
    return out.reshape(orig_shape)


def _reference(x, weight, bias, eps=1e-12):
    x = x.astype(jnp.float32)
    mean = jnp.mean(x, axis=-1, keepdims=True)
    xz = x - mean
    var = jnp.mean(xz * xz, axis=-1, keepdims=True)
    y = xz / jnp.sqrt(var + eps)
    return weight * y + bias


if __name__ == "__main__":
    key = jax.random.PRNGKey(0)

    # Case 1: module's small test shape — hidden=32 exercises the lane-padding path.
    batch, seq, hidden = 2, 8, 32
    x = jax.random.normal(key, (batch, seq, hidden), dtype=jnp.float32)
    weight = jnp.ones((hidden,), dtype=jnp.float32)   # nn.Parameter(ones)
    bias = jnp.zeros((hidden,), dtype=jnp.float32)    # nn.Parameter(zeros)
    out = jax.block_until_ready(esm1_layernorm(x, weight, bias, eps=1e-12))
    assert out.shape == x.shape
    assert jnp.allclose(out, _reference(x, weight, bias), atol=1e-5, rtol=1e-5)

    # Case 2: lane-dense hidden + row count not a multiple of the sublane pack
    # (exercises the un-padded partial row block that replaced jnp.pad/slice).
    k1, k2, k3 = jax.random.split(key, 3)
    x2 = jax.random.normal(k1, (3, 5, 256), dtype=jnp.float32)
    w2 = jax.random.normal(k2, (256,), dtype=jnp.float32)
    b2 = jax.random.normal(k3, (256,), dtype=jnp.float32)
    out2 = jax.block_until_ready(esm1_layernorm(x2, w2, b2, eps=1e-12))
    assert jnp.allclose(out2, _reference(x2, w2, b2), atol=1e-5, rtol=1e-5)

    # Case 3: multi-step grid with a partial last block (force a small row tile).
    x3 = jax.random.normal(k2, (4, 5, 128), dtype=jnp.float32)
    w3 = jnp.ones((128,), dtype=jnp.float32)
    b3 = jnp.zeros((128,), dtype=jnp.float32)
    out3 = jax.block_until_ready(esm1_layernorm(x3, w3, b3, eps=1e-12, row_tile=8))
    assert jnp.allclose(out3, _reference(x3, w3, b3), atol=1e-5, rtol=1e-5)

    print("KERNEL_OK")
</pallas_src>

<mosaic_0001>
module attributes {stable_mosaic.version = 11 : i64} {
  func.func @_esm1_layernorm_kernel(%arg0: i32, %arg1: memref<16x128xf32, #tpu.memory_space<vmem>>, %arg2: memref<1x128xf32, #tpu.memory_space<vmem>>, %arg3: memref<1x128xf32, #tpu.memory_space<vmem>>, %arg4: memref<16x128xf32, #tpu.memory_space<vmem>>) attributes {dimension_semantics = [#tpu.dimension_semantics<parallel>], iteration_bounds = array<i64: 1>, scalar_prefetch = 0 : i64, scratch_operands = 0 : i64, tpu.core_type = #tpu.core_type<tc>, window_params = [{transform_indices = @transform_0, window_bounds = array<i64: 16, 128>}, {pipeline_mode = #tpu.pipeline_mode<synchronous>, transform_indices = @transform_1, window_bounds = array<i64: 1, 128>}, {pipeline_mode = #tpu.pipeline_mode<synchronous>, transform_indices = @transform_2, window_bounds = array<i64: 1, 128>}, {transform_indices = @transform_3, window_bounds = array<i64: 16, 128>}]} {
    %c0 = arith.constant 0 : index
    %c0_0 = arith.constant 0 : index
    %0 = vector.load %arg1[%c0, %c0_0] : memref<16x128xf32, #tpu.memory_space<vmem>>, vector<16x128xf32>
    %cst = arith.constant dense<0.000000e+00> : vector<16xf32>
    %1 = vector.multi_reduction <add>, %0, %cst [1] : vector<16x128xf32> to vector<16xf32>
    %2 = vector.shape_cast %1 : vector<16xf32> to vector<16x1xf32>
    %cst_1 = arith.constant 3.125000e-02 : f32
    %3 = vector.broadcast %cst_1 : f32 to vector<16x1xf32>
    %4 = arith.mulf %2, %3 : vector<16x1xf32>
    %5 = vector.broadcast %4 : vector<16x1xf32> to vector<16x128xf32>
    %6 = arith.subf %0, %5 : vector<16x128xf32>
    %7 = tpu.iota {dimensions = array<i32: 1>} : vector<16x128xi32>
    %c32_i32 = arith.constant 32 : i32
    %8 = vector.broadcast %c32_i32 : i32 to vector<16x128xi32>
    %9 = arith.cmpi slt, %7, %8 : vector<16x128xi32>
    %10 = arith.mulf %6, %6 : vector<16x128xf32>
    %cst_2 = arith.constant 0.000000e+00 : f32
    %11 = vector.broadcast %cst_2 : f32 to vector<16x128xf32>
    %12 = arith.select %9, %10, %11 : vector<16x128xi1>, vector<16x128xf32>
    %cst_3 = arith.constant dense<0.000000e+00> : vector<16xf32>
    %13 = vector.multi_reduction <add>, %12, %cst_3 [1] : vector<16x128xf32> to vector<16xf32>
    %14 = vector.shape_cast %13 : vector<16xf32> to vector<16x1xf32>
    %cst_4 = arith.constant 3.125000e-02 : f32
    %15 = vector.broadcast %cst_4 : f32 to vector<16x1xf32>
    %16 = arith.mulf %14, %15 : vector<16x1xf32>
    %cst_5 = arith.constant 9.99999996E-13 : f32
    %17 = vector.broadcast %cst_5 : f32 to vector<16x1xf32>
    %18 = arith.addf %16, %17 : vector<16x1xf32>
    %19 = math.rsqrt %18 : vector<16x1xf32>
    %20 = vector.broadcast %19 : vector<16x1xf32> to vector<16x128xf32>
    %21 = arith.mulf %6, %20 : vector<16x128xf32>
    %c0_6 = arith.constant 0 : index
    %c0_7 = arith.constant 0 : index
    %22 = vector.load %arg2[%c0_6, %c0_7] : memref<1x128xf32, #tpu.memory_space<vmem>>, vector<1x128xf32>
    %23 = vector.broadcast %22 : vector<1x128xf32> to vector<16x128xf32>
    %24 = arith.mulf %23, %21 : vector<16x128xf32>
    %c0_8 = arith.constant 0 : index
    %c0_9 = arith.constant 0 : index
    %25 = vector.load %arg3[%c0_8, %c0_9] : memref<1x128xf32, #tpu.memory_space<vmem>>, vector<1x128xf32>
    %26 = vector.broadcast %25 : vector<1x128xf32> to vector<16x128xf32>
    %27 = arith.addf %24, %26 : vector<16x128xf32>
    %c0_10 = arith.constant 0 : index
    %c0_11 = arith.constant 0 : index
    %28 = vector.load %arg4[%c0_10, %c0_11] : memref<16x128xf32, #tpu.memory_space<vmem>>, vector<16x128xf32>
    tpu.vector_store %arg4[%c0_10, %c0_11], %27 {strides = array<i32>} : memref<16x128xf32, #tpu.memory_space<vmem>>, vector<16x128xf32>,
    return
  }
  func.func @transform_0(%arg0: i32) -> (i32, i32) {
    %c0_i32 = arith.constant 0 : i32
    %c0_i32_0 = arith.constant 0 : i32
    return %arg0, %c0_i32 : i32, i32
  }
  func.func @transform_1(%arg0: i32) -> (i32, i32) {
    %c0_i32 = arith.constant 0 : i32
    %c0_i32_0 = arith.constant 0 : i32
    %c0_i32_1 = arith.constant 0 : i32
    return %c0_i32, %c0_i32_0 : i32, i32
  }
  func.func @transform_2(%arg0: i32) -> (i32, i32) {
    %c0_i32 = arith.constant 0 : i32
    %c0_i32_0 = arith.constant 0 : i32
    %c0_i32_1 = arith.constant 0 : i32
    return %c0_i32, %c0_i32_0 : i32, i32
  }
  func.func @transform_3(%arg0: i32) -> (i32, i32) {
    %c0_i32 = arith.constant 0 : i32
    %c0_i32_0 = arith.constant 0 : i32
    return %arg0, %c0_i32 : i32, i32
  }
}

</mosaic_0001>

<llo_original>
// kernel: tpu_custom_call.1
$region0: #{tpu_custom_call.1}
  #allocation0 [shape = 'u32[]', space=smem, size = 0x4, offset = 0x4, fixed_abs, tag = 'smem constant byte address 0x4 - core index']
  #allocation1 [shape = 'u32[144,128]{1,0:T(1,128)}', space=vmem, size = 0x12000, scoped, tag = 'internal scratch']
  %s0 = inlined_call_operand.hbm [shape: f32[16,128], index: 0, kind: input, shape index: {}]
  %s1 = inlined_call_operand.hbm [shape: f32[1,128], index: 1, kind: input, shape index: {}]
  %s2 = inlined_call_operand.hbm [shape: f32[1,128], index: 2, kind: input, shape index: {}]
  %s3 = inlined_call_operand.hbm [shape: f32[16,128], index: 3, kind: output, shape index: {}]
  %s4 = sld [smem:[#allocation0]]
  $region34: #{tpu_custom_call.1} parent=0
    _
  %s6 = ssub.s32 1, %s4
  %s7 = scalar_select 0, %s6, %s4
  $region1: #{tpu_custom_call.1} parent=0
    #allocation2 [shape = 'u8[8192]{0}', space=vmem, size = 0x2000, scoped, tag = 'input window, operand 0, single buffered']
    #allocation3 [shape = 's32[1]{0}', space=sflag, size = 0x4, scoped, tag = 'scoped memory for tpu_custom_call.1']
    #allocation4 [shape = 's32[1]{0}', space=sflag, size = 0x4, scoped, tag = 'scoped memory for tpu_custom_call.1']
    #allocation5 [shape = 'u8[512]{0}', space=vmem, size = 0x400, scoped, tag = 'input window, operand 1, single buffered']
    #allocation6 [shape = 's32[1]{0}', space=sflag, size = 0x4, scoped, tag = 'scoped memory for tpu_custom_call.1']
    #allocation7 [shape = 'u8[512]{0}', space=vmem, size = 0x400, scoped, tag = 'input window, operand 2, single buffered']
    #allocation8 [shape = 'u8[8192]{0}', space=vmem, size = 0x2000, scoped, tag = 'output window, operand 0, single buffered']
    %8 = vsyncpa [#allocation3], 0
    %9 = vsyncpa [#allocation6], 0
    %10 = vsyncpa [#allocation4], 0
    // Predicated region
    $region2: #{tpu_custom_call.1} parent=1 // pred_check
      _
    $region3: #{tpu_custom_call.1} parent=1 // pred_check_branch
      %12 = sbr.rel (0) target = $region5
    $region4: #{tpu_custom_call.1} parent=1 // pred_region
      %s14 = ssub.s32 256, 256
      %15 = vsyncadd [#allocation3], %s14
      %s16 = sshll.u32 [#allocation2], 4
      %s17 = int_to_ptr.vmem [resolvable:$true] %s16
      %22 = dma.hbm_to_vmem [thread:$0]  %s0, 256, %s17, [#allocation3], 128, 128, 8
    $region5: #{tpu_custom_call.1} parent=1 // pred_fallthru
      _
    // Predicated region
    $region6: #{tpu_custom_call.1} parent=1 // pred_check
      _
    $region7: #{tpu_custom_call.1} parent=1 // pred_check_branch
      %24 = sbr.rel (0) target = $region9
    $region8: #{tpu_custom_call.1} parent=1 // pred_region
      %s26 = ssub.s32 16, 16
      %27 = vsyncadd [#allocation6], %s26
      %s29 = sshll.u32 [#allocation5], 4
      %s30 = int_to_ptr.vmem [resolvable:$true] %s29
      %32 = dma.hbm_to_vmem [thread:$0]  %s1, 16, %s30, [#allocation6]
    $region9: #{tpu_custom_call.1} parent=1 // pred_fallthru
      _
    // Predicated region
    $region10: #{tpu_custom_call.1} parent=1 // pred_check
      _
    $region11: #{tpu_custom_call.1} parent=1 // pred_check_branch
      %34 = sbr.rel (0) target = $region13
    $region12: #{tpu_custom_call.1} parent=1 // pred_region
      %s36 = ssub.s32 16, 16
      %37 = vsyncadd [#allocation6], %s36
      %s39 = sshll.u32 [#allocation7], 4
      %s40 = int_to_ptr.vmem [resolvable:$true] %s39
      %42 = dma.hbm_to_vmem [thread:$0]  %s2, 16, %s40, [#allocation6]
    $region13: #{tpu_custom_call.1} parent=1 // pred_fallthru
      _
    // Predicated region
    $region14: #{tpu_custom_call.1} parent=1 // pred_check
      _
    $region15: #{tpu_custom_call.1} parent=1 // pred_check_branch
      %44 = sbr.rel (0) target = $region17
    $region16: #{tpu_custom_call.1} parent=1 // pred_region
      %45 = dma.done [#allocation3], 256
    $region17: #{tpu_custom_call.1} parent=1 // pred_fallthru
      _
    // Predicated region
    $region18: #{tpu_custom_call.1} parent=1 // pred_check
      _
    $region19: #{tpu_custom_call.1} parent=1 // pred_check_branch
      %47 = sbr.rel (0) target = $region21
    $region20: #{tpu_custom_call.1} parent=1 // pred_region
      %48 = dma.done [#allocation6], 16
    $region21: #{tpu_custom_call.1} parent=1 // pred_fallthru
      _
    // Predicated region
    $region22: #{tpu_custom_call.1} parent=1 // pred_check
      _
    $region23: #{tpu_custom_call.1} parent=1 // pred_check_branch
      %50 = sbr.rel (0) target = $region25
    $region24: #{tpu_custom_call.1} parent=1 // pred_region
      %51 = dma.done [#allocation6], 16
    $region25: #{tpu_custom_call.1} parent=1 // pred_fallthru
      _
    %v52 = vld [vmem:[#allocation2] sm:$0xff]
    %v53 = vld [vmem:[#allocation2 + $0x8] sm:$0xff]
    %54 = vadd.xlane.f32.xlu0 %v52
    %v55 = vpop.xlane.xlu0 %54
    %56 = vadd.xlane.f32.xlu0 %v53
    %v57 = vpop.xlane.xlu0 %56
    %v58 = vmul.f32 %v55, 0.03125
    %v59 = vmul.f32 %v57, 0.03125
    %v60 = vsub.f32 %v52, %v58
    %v61 = vsub.f32 %v53, %v59
    %v62 = vlaneseq
    %v63 = vand.u32 %v62, 127
    %vm64 = vcmp.lt.s32.totalorder %v63, 32
    %v65 = vmul.f32 %v60, %v60
    %v66 = vmul.f32 %v61, %v61
    %v67 = vsel %vm64, %v65, 0.0
    %v68 = vsel %vm64, %v66, 0.0
    %69 = vadd.xlane.f32.xlu0 %v67
    %v70 = vpop.xlane.xlu0 %69
    %71 = vadd.xlane.f32.xlu0 %v68
    %v72 = vpop.xlane.xlu0 %71
    %v73 = vmul.f32 %v70, 0.03125
    %v74 = vmul.f32 %v72, 0.03125
    %v75 = vadd.f32 %v73, 1e-12
    %v76 = vadd.f32 %v74, 1e-12
    %v77 = vrsqrt.pop %v75
    %v78 = vrsqrt.pop %v76
    %v79 = vmul.f32 %v60, %v77
    %v80 = vmul.f32 %v61, %v78
    %v81 = vld [vmem:[#allocation5] sm:$0x1]
    %v83 = vlaneseq
    %v84 = vshrl.u32 %v83, 7
    %v85 = vsub.s32 0, %v84
    %v86 = vrot.slane %v81, %v85
    %v88 = vmul.f32 %v86, %v79
    %v89 = vmul.f32 %v86, %v80
    %v90 = vld [vmem:[#allocation7] sm:$0x1]
    %v92 = vlaneseq
    %v93 = vshrl.u32 %v92, 7
    %v94 = vsub.s32 0, %v93
    %v95 = vrot.slane %v90, %v94
    %v97 = vadd.f32 %v88, %v95
    %v98 = vadd.f32 %v89, %v95
    %99 = vst [vmem:[#allocation8] sm:$0xff] %v97
    %100 = vst [vmem:[#allocation8 + $0x8] sm:$0xff] %v98
    // Predicated region
    $region26: #{tpu_custom_call.1} parent=1 // pred_check
      _
    $region27: #{tpu_custom_call.1} parent=1 // pred_check_branch
      %102 = sbr.rel (0) target = $region29
    $region28: #{tpu_custom_call.1} parent=1 // pred_region
      %s104 = ssub.s32 256, 256
      %105 = vsyncadd [#allocation4], %s104
      %s106 = sshll.u32 [#allocation8], 4
      %s107 = int_to_ptr.vmem [resolvable:$true] %s106
      %112 = dma.vmem_to_hbm [thread:$0]  %s107, 256, %s3, [#allocation4], 128, 128, 8
    $region29: #{tpu_custom_call.1} parent=1 // pred_fallthru
      _
    // Predicated region
    $region30: #{tpu_custom_call.1} parent=1 // pred_check
      _
    $region31: #{tpu_custom_call.1} parent=1 // pred_check_branch
      %114 = sbr.rel (0) target = $region33
    $region32: #{tpu_custom_call.1} parent=1 // pred_region
      %115 = dma.done [#allocation4], 256
    $region33: #{tpu_custom_call.1} parent=1 // pred_fallthru
      _
    %116 = vsyncpa [#allocation3], 1
    %117 = vsyncpa [#allocation6], 1
    %118 = vsyncpa [#allocation4], 1

</llo_original>
